<compile_context>
chip_gen: v7x
topology: tpu7x:2x2x1
jax: 0.10.0
libtpu: 0.0.40
codegen_flags: <defaults>
</compile_context>

<pallas_src>
import functools

import jax
import jax.numpy as jnp
from jax.experimental import pallas as pl
from jax.experimental.pallas import tpu as pltpu


def _round_up(x, m):
    return ((x + m - 1) // m) * m


def _block_bytes(rows, cols, itemsize):
    """VMEM footprint of a 2-D block, (8, 128)-tile aware."""
    return (_round_up(max(int(rows), 1), 8)
            * _round_up(max(int(cols), 1), 128) * itemsize)


def _vmem_limits():
    """Generation-aware VMEM (working-set budget, compiler limit)."""
    try:
        cap = int(pltpu.get_tpu_info().vmem_capacity_bytes)
    except Exception:
        cap = 64 * 1024 * 1024          # conservative fallback: v7x-sized VMEM
    cap = max(cap, 32 * 1024 * 1024)
    budget = int(cap * 0.70)
    limit = min(int(cap * 0.85), 120 * 1024 * 1024)
    return budget, limit


def _choose_row_tile(n_rows, bytes_for_tm, budget, max_tm):
    """Largest row tile (multiple of 8) whose working set fits `budget`,
    preferring >= 2 row tiles so the parallel axis can feed both v7x cores."""
    n8 = _round_up(n_rows, 8)
    tm = max(8, min((max_tm // 8) * 8, n8))
    while tm > 8 and bytes_for_tm(tm) > budget:
        tm = max(8, ((tm // 2) // 8) * 8)
    if tm >= n8 and n8 >= 16:
        tm = _round_up(n8 // 2, 8)
    tiles = -(-n_rows // tm)            # cdiv over the *unpadded* row count
    return tm, tiles


def _rgc_fused_kernel(num_edge_types, matmul_dtype,
                      feat_ref, adj_ref, w_ref, short_ref, out_ref):
    """Fused path: out_tile += (A_e_tile @ X) @ W_e for e = 0..E-1.

    feat (N, Fin) resident; adj (TM, N) f32 row tile (cast in-kernel);
    w (E, Fin, Fop) f32 resident; short (TM, Fop) f32 (bias folded in);
    out (TM, Fop) f32 accumulator, resident across e.
    """
    e = pl.program_id(1)

    @pl.when(e == 0)
    def _init():
        out_ref[...] = jnp.zeros_like(out_ref)

    a_tile = adj_ref[...].astype(matmul_dtype)     # bf16 for the MXU, cast on-chip
    ax = jnp.dot(a_tile, feat_ref[...], preferred_element_type=jnp.float32)
    out_ref[...] += jnp.dot(ax, w_ref[e], preferred_element_type=jnp.float32)

    @pl.when(e == num_edge_types - 1)
    def _finalize():
        out_ref[...] = out_ref[...] * (1.0 / num_edge_types) + short_ref[...]


def _rgc_pretransformed_kernel(num_edge_types, matmul_dtype, xw_resident,
                               xw_ref, adj_ref, short_ref, out_ref):
    """Pre-transform path: XW_e = X @ W_e is produced wrapper-side; the kernel
    only runs the O(N^2) matmul out_tile += A_e_tile @ XW_e."""
    e = pl.program_id(1)

    @pl.when(e == 0)
    def _init():
        out_ref[...] = jnp.zeros_like(out_ref)

    xw = xw_ref[e] if xw_resident else xw_ref[...]
    a_tile = adj_ref[...].astype(matmul_dtype)
    out_ref[...] += jnp.dot(a_tile, xw, preferred_element_type=jnp.float32)

    @pl.when(e == num_edge_types - 1)
    def _finalize():
        out_ref[...] = out_ref[...] * (1.0 / num_edge_types) + short_ref[...]


def residual_graph_convolution(features, adjacency, weight, bias,
                               proj_weight, proj_bias, *,
                               max_row_tile=1024, matmul_dtype=jnp.bfloat16):
    """features: (N, Fin); adjacency: (E, N, N) or (N, N); weight: (E, Fin, Fout);
    bias: (E, 1, Fout) or None; proj_weight: (Fout, Fin) torch-Linear layout or
    None (iff Fin == Fout); proj_bias: (Fout,) or None."""
    f32 = jnp.float32
    features = jnp.asarray(features)
    adjacency = jnp.asarray(adjacency)
    if adjacency.ndim == 2:
        adjacency = adjacency[None]
    if adjacency.dtype not in (jnp.float32, jnp.bfloat16):
        adjacency = adjacency.astype(f32)
    E, N, _ = adjacency.shape
    Fin = features.shape[-1]
    Fout = weight.shape[-1]
    has_proj = proj_weight is not None
    assert has_proj == (Fin != Fout), "projection must be given iff Fin != Fout"

    feats32 = features.astype(f32)

    # Hoisted bias: sum_e b_e / E, folded into the shortcut below.
    if bias is None:
        b_comb = jnp.zeros((Fout,), f32)
    else:
        b_comb = jnp.sum(jnp.asarray(bias, f32).reshape(E, Fout), axis=0) / float(E)

    # Shortcut (+ hoisted bias), wrapper-side: tiny vs the O(E*N^2*K) matmuls.
    if has_proj:
        short = feats32 @ jnp.asarray(proj_weight, f32).T
        if proj_bias is not None:
            short = short + jnp.asarray(proj_bias, f32)
    else:
        short = feats32
    short = short + b_comb[None, :]

    fout_p = _round_up(Fout, 128)             # lane-dense output columns
    msize = 2 if matmul_dtype == jnp.bfloat16 else 4
    budget, vmem_limit = _vmem_limits()

    # Contract the O(N^2) matmul over the narrower width.
    use_pretransform = has_proj and (fout_p < Fin)

    if not use_pretransform:
        # ---- fused path: (A_e @ X) @ W_e in-kernel ----
        feats_mm = feats32.astype(matmul_dtype)                      # (N, Fin)
        w_p = jnp.pad(jnp.asarray(weight, f32),
                      ((0, 0), (0, 0), (0, fout_p - Fout)))          # (E, Fin, Fop)
        w_bytes = E * _block_bytes(Fin, fout_p, 4)

        def bytes_for_tm(tm):
            return (2 * _block_bytes(tm, N, 4)           # A row tile (f32, streamed)
                    + 2 * _block_bytes(N, Fin, msize)    # resident X
                    + 2 * w_bytes                        # resident all-E weights
                    + 4 * _block_bytes(tm, fout_p, 4))   # shortcut tile + out block

        tm, tiles_m = _choose_row_tile(N, bytes_for_tm, budget, max_row_tile)
        n_rows_pad = tm * tiles_m

        short_p = jnp.pad(short, ((0, n_rows_pad - N), (0, fout_p - Fout)))
        operands = [feats_mm, adjacency, w_p, short_p]
        in_specs = [
            pl.BlockSpec((N, Fin), lambda i, e: (0, 0)),                   # X resident
            pl.BlockSpec((pl.Squeezed(), tm, N), lambda i, e: (e, i, 0)),  # A_e row tile
            pl.BlockSpec((E, Fin, fout_p), lambda i, e: (0, 0, 0)),        # all W_e resident
            pl.BlockSpec((tm, fout_p), lambda i, e: (i, 0)),               # shortcut tile
        ]
        kernel = functools.partial(_rgc_fused_kernel, E, matmul_dtype)
    else:
        # ---- pre-transform path: XW_e = X @ W_e produced (directly in bf16) ----
        xw = jnp.einsum('nf,efo->eno', feats32, jnp.asarray(weight, f32))
        xw_p = jnp.pad(xw, ((0, 0), (0, 0), (0, fout_p - Fout))).astype(matmul_dtype)

        xw_all_bytes = E * _block_bytes(N, fout_p, msize)
        xw_resident = (2 * xw_all_bytes) <= budget // 2

        def bytes_for_tm(tm):
            return (2 * _block_bytes(tm, N, 4)
                    + 2 * (xw_all_bytes if xw_resident
                           else _block_bytes(N, fout_p, msize))
                    + 4 * _block_bytes(tm, fout_p, 4))

        tm, tiles_m = _choose_row_tile(N, bytes_for_tm, budget, max_row_tile)
        n_rows_pad = tm * tiles_m

        short_p = jnp.pad(short, ((0, n_rows_pad - N), (0, fout_p - Fout)))
        operands = [xw_p, adjacency, short_p]
        if xw_resident:
            xw_spec = pl.BlockSpec((E, N, fout_p), lambda i, e: (0, 0, 0))
        else:
            xw_spec = pl.BlockSpec((pl.Squeezed(), N, fout_p), lambda i, e: (e, 0, 0))
        in_specs = [
            xw_spec,
            pl.BlockSpec((pl.Squeezed(), tm, N), lambda i, e: (e, i, 0)),  # A_e row tile
            pl.BlockSpec((tm, fout_p), lambda i, e: (i, 0)),               # shortcut tile
        ]
        kernel = functools.partial(_rgc_pretransformed_kernel, E, matmul_dtype,
                                   xw_resident)

    out_padded = pl.pallas_call(
        kernel,
        out_shape=jax.ShapeDtypeStruct((n_rows_pad, fout_p), jnp.float32),
        grid_spec=pltpu.PrefetchScalarGridSpec(
            num_scalar_prefetch=0,
            grid=(tiles_m, E),
            in_specs=in_specs,
            out_specs=pl.BlockSpec((tm, fout_p), lambda i, e: (i, 0)),
        ),
        compiler_params=pltpu.CompilerParams(
            dimension_semantics=("parallel", "arbitrary"),
            vmem_limit_bytes=vmem_limit),
    )(*operands)

    return out_padded[:N, :Fout]


def _reference(features, adjacency, weight, bias, proj_weight, proj_bias):
    features = features.astype(jnp.float32)
    adjacency = adjacency.astype(jnp.float32)
    weight = weight.astype(jnp.float32)
    if adjacency.ndim == 2:
        adjacency = adjacency[None]
    E = adjacency.shape[0]
    expanded = jnp.broadcast_to(features[None], (E,) + features.shape)
    out = adjacency @ expanded @ weight
    if bias is not None:
        out = out + bias.astype(jnp.float32)
    y = jnp.sum(out, axis=0) / E
    if proj_weight is None:
        shortcut = features
    else:
        shortcut = (features @ proj_weight.T.astype(jnp.float32)
                    + proj_bias.astype(jnp.float32))
    return y + shortcut


if __name__ == "__main__":
    key = jax.random.PRNGKey(0)

    def make_case(case_key, N, Fin, Fout, E):
        k1, k2, k3, k4, k5, k6 = jax.random.split(case_key, 6)
        features = jax.random.normal(k1, (N, Fin), dtype=jnp.float32)
        adjacency = jax.random.uniform(k2, (E, N, N), dtype=jnp.float32)
        adjacency = adjacency / jnp.sum(adjacency, axis=-1, keepdims=True)
        weight = jax.random.uniform(k3, (E, Fin, Fout), dtype=jnp.float32,
                                    minval=-0.3, maxval=0.3)
        bias = jax.random.uniform(k4, (E, 1, Fout), dtype=jnp.float32,
                                  minval=-0.3, maxval=0.3)
        if Fin != Fout:
            proj_weight = jax.random.uniform(k5, (Fout, Fin), dtype=jnp.float32,
                                             minval=-0.25, maxval=0.25)
            proj_bias = jax.random.uniform(k6, (Fout,), dtype=jnp.float32,
                                           minval=-0.25, maxval=0.25)
        else:
            proj_weight, proj_bias = None, None
        return features, adjacency, weight, bias, proj_weight, proj_bias

    cases = [
        # (N, Fin, Fout, E, max_row_tile)
        (8, 16, 32, 2, 512),    # fused path, single row tile, projected shortcut
        (32, 16, 32, 2, 8),     # fused path, 4 row tiles on the parallel axis
        (20, 256, 32, 2, 8),    # pre-transform path (Fout << Fin), ragged last tile
        (24, 32, 32, 1, 512),   # identity shortcut (Fin == Fout), 2 row tiles
    ]
    keys = jax.random.split(key, len(cases))
    for case_key, (N, Fin, Fout, E, max_tm) in zip(keys, cases):
        args = make_case(case_key, N, Fin, Fout, E)
        ref = _reference(*args)

        # f32 matmul path: tight check of kernel structure / tiling / masking.
        out32 = jax.block_until_ready(
            residual_graph_convolution(*args, max_row_tile=max_tm,
                                       matmul_dtype=jnp.float32))
        assert out32.shape == (N, Fout), (out32.shape, (N, Fout))
        assert jnp.allclose(out32, ref, atol=2e-3, rtol=2e-3), \
            ("f32", N, Fin, Fout, E, float(jnp.max(jnp.abs(out32 - ref))))

        # default bf16-operand path: looser check (bf16 rounding of the matmul
        # operands only; accumulation / preferred_element_type stay f32).
        outbf = jax.block_until_ready(
            residual_graph_convolution(*args, max_row_tile=max_tm))
        err = float(jnp.max(jnp.abs(outbf - ref)))
        tol = 0.05 * max(1.0, float(jnp.max(jnp.abs(ref))))
        assert outbf.shape == (N, Fout), (outbf.shape, (N, Fout))
        assert err < tol, ("bf16", N, Fin, Fout, E, err, tol)

    print("KERNEL_OK")
</pallas_src>

<mosaic_0001>
module attributes {stable_mosaic.version = 11 : i64} {
  func.func @_rgc_fused_kernel(%arg0: i32, %arg1: i32, %arg2: memref<8x16xf32, #tpu.memory_space<vmem>>, %arg3: memref<1x8x8xf32, #tpu.memory_space<vmem>>, %arg4: memref<2x16x128xf32, #tpu.memory_space<vmem>>, %arg5: memref<8x128xf32, #tpu.memory_space<vmem>>, %arg6: memref<8x128xf32, #tpu.memory_space<vmem>>) attributes {dimension_semantics = [#tpu.dimension_semantics<parallel>, #tpu.dimension_semantics<arbitrary>], iteration_bounds = array<i64: 1, 2>, scalar_prefetch = 0 : i64, scratch_operands = 0 : i64, tpu.core_type = #tpu.core_type<tc>, window_params = [{pipeline_mode = #tpu.pipeline_mode<synchronous>, transform_indices = @transform_0, window_bounds = array<i64: 8, 16>}, {transform_indices = @transform_1, window_bounds = array<i64: 1, 8, 8>}, {pipeline_mode = #tpu.pipeline_mode<synchronous>, transform_indices = @transform_2, window_bounds = array<i64: 2, 16, 128>}, {transform_indices = @transform_3, window_bounds = array<i64: 8, 128>}, {transform_indices = @transform_4, window_bounds = array<i64: 8, 128>}]} {
    %c0_i32 = arith.constant 0 : i32
    %0 = arith.cmpi eq, %arg1, %c0_i32 : i32
    %1 = arith.extui %0 : i1 to i32
    %c0_i32_0 = arith.constant 0 : i32
    %2 = arith.cmpi ne, %1, %c0_i32_0 : i32
    scf.if %2 {
      %cst_13 = arith.constant 0.000000e+00 : f32
      %17 = vector.broadcast %cst_13 : f32 to vector<8x128xf32>
      %c0_14 = arith.constant 0 : index
      %c0_15 = arith.constant 0 : index
      %18 = vector.load %arg6[%c0_14, %c0_15] : memref<8x128xf32, #tpu.memory_space<vmem>>, vector<8x128xf32>
      tpu.vector_store %arg6[%c0_14, %c0_15], %17 {strides = array<i32>} : memref<8x128xf32, #tpu.memory_space<vmem>>, vector<8x128xf32>,
    } else {
    }
    %c0 = arith.constant 0 : index
    %c0_1 = arith.constant 0 : index
    %c0_2 = arith.constant 0 : index
    %3 = vector.load %arg3[%c0, %c0_1, %c0_2] : memref<1x8x8xf32, #tpu.memory_space<vmem>>, vector<1x8x8xf32>
    %4 = vector.shape_cast %3 : vector<1x8x8xf32> to vector<8x8xf32>
    %c0_3 = arith.constant 0 : index
    %c0_4 = arith.constant 0 : index
    %5 = vector.load %arg2[%c0_3, %c0_4] : memref<8x16xf32, #tpu.memory_space<vmem>>, vector<8x16xf32>
    %cst = arith.constant dense<0.000000e+00> : vector<8x16xf32>
    %6 = tpu.matmul %4, %5, %cst {dimension_numbers = #tpu.dot_dimension_numbers<[1], [0], [0], [1], [0, 0, 1, 1], [], []>} : vector<8x8xf32>, vector<8x16xf32>, vector<8x16xf32> -> vector<8x16xf32>
    %c0_5 = arith.constant 0 : index
    %c0_6 = arith.constant 0 : index
    %7 = vector.load %arg6[%c0_5, %c0_6] : memref<8x128xf32, #tpu.memory_space<vmem>>, vector<8x128xf32>
    %8 = arith.index_cast %arg1 : i32 to index
    %c0_7 = arith.constant 0 : index
    %c0_8 = arith.constant 0 : index
    %9 = vector.load %arg4[%8, %c0_7, %c0_8] : memref<2x16x128xf32, #tpu.memory_space<vmem>>, vector<1x16x128xf32>
    %10 = vector.shape_cast %9 : vector<1x16x128xf32> to vector<16x128xf32>
    %cst_9 = arith.constant dense<0.000000e+00> : vector<8x128xf32>
    %11 = tpu.matmul %6, %10, %cst_9 {dimension_numbers = #tpu.dot_dimension_numbers<[1], [0], [0], [1], [0, 0, 1, 1], [], []>} : vector<8x16xf32>, vector<16x128xf32>, vector<8x128xf32> -> vector<8x128xf32>
    %12 = arith.addf %7, %11 : vector<8x128xf32>
    %c0_10 = arith.constant 0 : index
    %c0_11 = arith.constant 0 : index
    %13 = vector.load %arg6[%c0_10, %c0_11] : memref<8x128xf32, #tpu.memory_space<vmem>>, vector<8x128xf32>
    tpu.vector_store %arg6[%c0_10, %c0_11], %12 {strides = array<i32>} : memref<8x128xf32, #tpu.memory_space<vmem>>, vector<8x128xf32>,
    %c1_i32 = arith.constant 1 : i32
    %14 = arith.cmpi eq, %arg1, %c1_i32 : i32
    %15 = arith.extui %14 : i1 to i32
    %c0_i32_12 = arith.constant 0 : i32
    %16 = arith.cmpi ne, %15, %c0_i32_12 : i32
    scf.if %16 {
      %c0_13 = arith.constant 0 : index
      %c0_14 = arith.constant 0 : index
      %17 = vector.load %arg6[%c0_13, %c0_14] : memref<8x128xf32, #tpu.memory_space<vmem>>, vector<8x128xf32>
      %cst_15 = arith.constant 5.000000e-01 : f32
      %18 = vector.broadcast %cst_15 : f32 to vector<8x128xf32>
      %19 = arith.mulf %17, %18 : vector<8x128xf32>
      %c0_16 = arith.constant 0 : index
      %c0_17 = arith.constant 0 : index
      %20 = vector.load %arg5[%c0_16, %c0_17] : memref<8x128xf32, #tpu.memory_space<vmem>>, vector<8x128xf32>
      %21 = arith.addf %19, %20 : vector<8x128xf32>
      %c0_18 = arith.constant 0 : index
      %c0_19 = arith.constant 0 : index
      %22 = vector.load %arg6[%c0_18, %c0_19] : memref<8x128xf32, #tpu.memory_space<vmem>>, vector<8x128xf32>
      tpu.vector_store %arg6[%c0_18, %c0_19], %21 {strides = array<i32>} : memref<8x128xf32, #tpu.memory_space<vmem>>, vector<8x128xf32>,
    } else {
    }
    return
  }
  func.func @transform_0(%arg0: i32, %arg1: i32) -> (i32, i32) {
    %c0_i32 = arith.constant 0 : i32
    %c0_i32_0 = arith.constant 0 : i32
    %c0_i32_1 = arith.constant 0 : i32
    return %c0_i32, %c0_i32_0 : i32, i32
  }
  func.func @transform_1(%arg0: i32, %arg1: i32) -> (i32, i32, i32) {
    %c0_i32 = arith.constant 0 : i32
    %c0_i32_0 = arith.constant 0 : i32
    return %arg1, %arg0, %c0_i32 : i32, i32, i32
  }
  func.func @transform_2(%arg0: i32, %arg1: i32) -> (i32, i32, i32) {
    %c0_i32 = arith.constant 0 : i32
    %c0_i32_0 = arith.constant 0 : i32
    %c0_i32_1 = arith.constant 0 : i32
    %c0_i32_2 = arith.constant 0 : i32
    return %c0_i32, %c0_i32_0, %c0_i32_1 : i32, i32, i32
  }
  func.func @transform_3(%arg0: i32, %arg1: i32) -> (i32, i32) {
    %c0_i32 = arith.constant 0 : i32
    %c0_i32_0 = arith.constant 0 : i32
    return %arg0, %c0_i32 : i32, i32
  }
  func.func @transform_4(%arg0: i32, %arg1: i32) -> (i32, i32) {
    %c0_i32 = arith.constant 0 : i32
    %c0_i32_0 = arith.constant 0 : i32
    return %arg0, %c0_i32 : i32, i32
  }
}

</mosaic_0001>

<llo_original>
// kernel: tpu_custom_call.1
$region0: #{tpu_custom_call.1}
  #allocation0 [shape = 'u32[]', space=smem, size = 0x4, offset = 0x4, fixed_abs, tag = 'smem constant byte address 0x4 - core index']
  #allocation1 [shape = 'u32[144,128]{1,0:T(1,128)}', space=vmem, size = 0x12000, scoped, tag = 'internal scratch']
  %s0 = inlined_call_operand.hbm [shape: f32[8,16], index: 0, kind: input, shape index: {}]
  %s1 = inlined_call_operand.hbm [shape: f32[2,8,8], index: 1, kind: input, shape index: {}]
  %s2 = inlined_call_operand.hbm [shape: f32[2,16,128], index: 2, kind: input, shape index: {}]
  %s3 = inlined_call_operand.vmem [shape: f32[8,128], index: 3, kind: input, shape index: {}]
  %s4 = inlined_call_operand.hbm [shape: f32[8,128], index: 4, kind: output, shape index: {}]
  %s5 = sld [smem:[#allocation0]]
  $region69: #{tpu_custom_call.1} parent=0
    _
  %s7 = ssub.s32 1, %s5
  %s8 = scalar_select 0, %s7, %s5
  $region1: #{tpu_custom_call.1} parent=0
    #allocation2 [shape = 'u8[4096]{0}', space=vmem, size = 0x1000, scoped, tag = 'input window, operand 0, single buffered']
    #allocation3 [shape = 's32[2]{0}', space=sflag, size = 0x8, scoped, tag = 'scoped memory for tpu_custom_call.1']
    #allocation4 [shape = 's32[2]{0}', space=sflag, size = 0x8, scoped, tag = 'scoped memory for tpu_custom_call.1']
    #allocation5 [shape = 'u8[8192]{0}', space=vmem, size = 0x2000, scoped, tag = 'input window, operand 1']
    #allocation6 [shape = 's32[2]{0}', space=sflag, size = 0x8, scoped, tag = 'scoped memory for tpu_custom_call.1']
    #allocation7 [shape = 'u8[16384]{0}', space=vmem, size = 0x4000, scoped, tag = 'input window, operand 2, single buffered']
    #allocation8 [shape = 'u8[4096]{0}', space=vmem, size = 0x1000, scoped, tag = 'output window, operand 0, single buffered']
    %9 = vsyncpa [#allocation3], 0
    %10 = vsyncpa [#allocation6], 0
    %s11 = scalar_lea.sflag [#allocation6], 1
    %12 = vsyncpa %s11, 0
    %13 = vsyncpa [#allocation4], 0
    loop: start=0, step=1, limit=4
    $region2: #{tpu_custom_call.1} parent=1 // loop_pre_header
      _
    $region3: #{tpu_custom_call.1} parent=1 // loop_header
      %s15 = sphi 0, %s19
      %p16 = scmp.ge.s32.totalorder %s15, 4
      %s22 = sphi 0, %s34
      %s23 = sphi 0, %s30
      %s24 = sphi 0, %s22
      %s25 = sphi 0, %s23
      %s26 = sphi 0, %s24
      %s27 = sphi 0, %s25
      %s35 = sphi 0, %s35
      %s37 = sphi 0, %s35
      %s38 = sphi 0, %s37
      %s52 = sphi 0, %s38
      %s60 = sphi 0, %s62
      %s63 = sphi 0, %s60
      %s64 = sphi 0, %s63
      %s80 = sphi 0, %s64
      %s84 = sphi 0, %s84
      %s86 = sphi 0, %s84
      %s87 = sphi 0, %s86
      %s101 = sphi 0, %s87
      %s107 = sphi 0, %s109
      %s110 = sphi 0, %s107
      %s111 = sphi 0, %s110
      %s127 = sphi 0, %s111
      %s133 = sphi 0, %s135
      %s136 = sphi 0, %s133
      %s137 = sphi 0, %s136
      %s153 = sphi 0, %s137
    $region4: #{tpu_custom_call.1} parent=1 // loop_header_branch
      %18 = sbr.rel (%p16) target = $region8
    $region5: #{tpu_custom_call.1} parent=1 // loop_body
      %s20 = ssub.s32 %s15, 1
      %s21 = ssub.s32 %s15, 2
      %s28 = sadd.s32 1, %s23
      %p29 = scmp.ge.s32.totalorder %s28, 2
      %s30 = scalar_select %p29, 0, %s28
      %s31 = sadd.s32 1, %s22
      %s32 = scalar_select %p29, %s31, %s22
      %p33 = scmp.ge.s32.totalorder %s32, 1
      %s34 = scalar_select %p33, 0, %s32
      %s36 = sadd.s32 %s35, 1
      %p39 = scmp.eq.s32.totalorder %s15, 1
      %p40 = scmp.ne.s32.totalorder %s35, %s37
      %p41 = scmp.eq.s32.totalorder %s15, 0
      %p42 = por %p40, %p41
      %p43 = scmp.ne.s32.totalorder %s35, %s37
      %p44 = scmp.eq.s32.totalorder %s20, 1
      %p45 = por %p43, %p44
      %p46 = scmp.ne.s32.totalorder %s37, %s38
      %p47 = scmp.eq.s32.totalorder %s20, 0
      %p48 = por %p46, %p47
      %p49 = scmp.ne.s32.totalorder %s37, %s38
      %p50 = scmp.eq.s32.totalorder %s21, 1
      %p51 = por %p49, %p50
      %p53 = scmp.ne.s32.totalorder %s38, %s52
      %p54 = scmp.eq.s32.totalorder %s21, 0
      %p55 = por %p53, %p54
      %s56 = ssub.s32 %s23, %s30
      %s57 = ssub.s32 %s22, %s34
      %s58 = sor.u32 %s56, %s57
      %p59 = scmp.eq.s32.totalorder %s58, 0
      %s61 = sadd.s32 %s60, 1
      %s62 = scalar_select %p59, %s60, %s61
      %p65 = pneg %p59
      %p66 = scmp.eq.s32.totalorder %s15, 1
      %p67 = por %p65, %p66
      %p68 = scmp.ne.s32.totalorder %s60, %s63
      %p69 = scmp.eq.s32.totalorder %s15, 0
      %p70 = por %p68, %p69
      %p71 = scmp.ne.s32.totalorder %s60, %s63
      %p72 = scmp.eq.s32.totalorder %s20, 1
      %p73 = por %p71, %p72
      %p74 = scmp.ne.s32.totalorder %s63, %s64
      %p75 = scmp.eq.s32.totalorder %s20, 0
      %p76 = por %p74, %p75
      %p77 = scmp.ne.s32.totalorder %s63, %s64
      %p78 = scmp.eq.s32.totalorder %s21, 1
      %p79 = por %p77, %p78
      %p81 = scmp.ne.s32.totalorder %s64, %s80
      %p82 = scmp.eq.s32.totalorder %s21, 0
      %p83 = por %p81, %p82
      %s85 = sadd.s32 %s84, 1
      %p88 = scmp.eq.s32.totalorder %s15, 1
      %p89 = scmp.ne.s32.totalorder %s84, %s86
      %p90 = scmp.eq.s32.totalorder %s15, 0
      %p91 = por %p89, %p90
      %p92 = scmp.ne.s32.totalorder %s84, %s86
      %p93 = scmp.eq.s32.totalorder %s20, 1
      %p94 = por %p92, %p93
      %p95 = scmp.ne.s32.totalorder %s86, %s87
      %p96 = scmp.eq.s32.totalorder %s20, 0
      %p97 = por %p95, %p96
      %p98 = scmp.ne.s32.totalorder %s86, %s87
      %p99 = scmp.eq.s32.totalorder %s21, 1
      %p100 = por %p98, %p99
      %p102 = scmp.ne.s32.totalorder %s87, %s101
      %p103 = scmp.eq.s32.totalorder %s21, 0
      %p104 = por %p102, %p103
      %s105 = ssub.s32 %s22, %s34
      %p106 = scmp.eq.s32.totalorder %s105, 0
      %s108 = sadd.s32 %s107, 1
      %s109 = scalar_select %p106, %s107, %s108
      %p112 = pneg %p106
      %p113 = scmp.eq.s32.totalorder %s15, 1
      %p114 = por %p112, %p113
      %p115 = scmp.ne.s32.totalorder %s107, %s110
      %p116 = scmp.eq.s32.totalorder %s15, 0
      %p117 = por %p115, %p116
      %p118 = scmp.ne.s32.totalorder %s107, %s110
      %p119 = scmp.eq.s32.totalorder %s20, 1
      %p120 = por %p118, %p119
      %p121 = scmp.ne.s32.totalorder %s110, %s111
      %p122 = scmp.eq.s32.totalorder %s20, 0
      %p123 = por %p121, %p122
      %p124 = scmp.ne.s32.totalorder %s110, %s111
      %p125 = scmp.eq.s32.totalorder %s21, 1
      %p126 = por %p124, %p125
      %p128 = scmp.ne.s32.totalorder %s111, %s127
      %p129 = scmp.eq.s32.totalorder %s21, 0
      %p130 = por %p128, %p129
      %s131 = ssub.s32 %s22, %s34
      %p132 = scmp.eq.s32.totalorder %s131, 0
      %s134 = sadd.s32 %s133, 1
      %s135 = scalar_select %p132, %s133, %s134
      %p138 = pneg %p132
      %p139 = scmp.eq.s32.totalorder %s15, 1
      %p140 = por %p138, %p139
      %p141 = scmp.ne.s32.totalorder %s133, %s136
      %p142 = scmp.eq.s32.totalorder %s15, 0
      %p143 = por %p141, %p142
      %p144 = scmp.ne.s32.totalorder %s133, %s136
      %p145 = scmp.eq.s32.totalorder %s20, 1
      %p146 = por %p144, %p145
      %p147 = scmp.ne.s32.totalorder %s136, %s137
      %p148 = scmp.eq.s32.totalorder %s20, 0
      %p149 = por %p147, %p148
      %p150 = scmp.ne.s32.totalorder %s136, %s137
      %p151 = scmp.eq.s32.totalorder %s21, 1
      %p152 = por %p150, %p151
      %p154 = scmp.ne.s32.totalorder %s137, %s153
      %p155 = scmp.eq.s32.totalorder %s21, 0
      %p156 = por %p154, %p155
      %p157 = scmp.le.s32.totalorder 1, %s15
      %p158 = scmp.lt.s32.totalorder %s15, 3
      %p159 = pnand %p157, %p158
      %p160 = pneg %p159
      // Predicated region
      $region9: #{tpu_custom_call.1} parent=5 // pred_check
        _
      $region10: #{tpu_custom_call.1} parent=5 // pred_check_branch
        %162 = sbr.rel (%p159) target = $region12
      $region11: #{tpu_custom_call.1} parent=5 // pred_region
        %s163 = ssub.s32 %s15, 1
        // Predicated region
        $region13: #{tpu_custom_call.1} parent=11 // pred_check
          %p164 = pneg %p48
        $region14: #{tpu_custom_call.1} parent=11 // pred_check_branch
          %166 = sbr.rel (%p164) target = $region16
        $region15: #{tpu_custom_call.1} parent=11 // pred_region
          %s168 = ssub.s32 128, 128
          %169 = vsyncadd [#allocation3], %s168
          %s171 = sshll.u32 [#allocation2], 4
          %s172 = int_to_ptr.vmem [resolvable:$true] %s171
          %174 = dma.hbm_to_vmem [thread:$0]  %s0, 128, %s172, [#allocation3]
        $region16: #{tpu_custom_call.1} parent=11 // pred_fallthru
          _
        // Predicated region
        $region17: #{tpu_custom_call.1} parent=11 // pred_check
          %p175 = pneg %p97
        $region18: #{tpu_custom_call.1} parent=11 // pred_check_branch
          %177 = sbr.rel (%p175) target = $region20
        $region19: #{tpu_custom_call.1} parent=11 // pred_region
          %s179 = ssub.s32 512, 512
          %180 = vsyncadd [#allocation6], %s179
          %s181 = sshll.u32 [#allocation7], 4
          %s182 = int_to_ptr.vmem [resolvable:$true] %s181
          %187 = dma.hbm_to_vmem [thread:$0]  %s2, 512, %s182, [#allocation6], 128, 128, 8
        $region20: #{tpu_custom_call.1} parent=11 // pred_fallthru
          _
        // Predicated region
        $region21: #{tpu_custom_call.1} parent=11 // pred_check
          %p188 = pneg %p123
        $region22: #{tpu_custom_call.1} parent=11 // pred_check_branch
          %190 = sbr.rel (%p188) target = $region24
        $region23: #{tpu_custom_call.1} parent=11 // pred_region
          %p191 = scmp.lt.s32.totalorder %s24, 0
          %s192 = scalar_select %p191, %s24, 0
          %s193 = smul.addr %s192, 8
          %s194 = scalar_lea.vmem %s3, %s193
        $region24: #{tpu_custom_call.1} parent=11 // pred_fallthru
          _
      $region12: #{tpu_custom_call.1} parent=5 // pred_fallthru
        _
      %p195 = scmp.lt.s32.totalorder %s15, 2
      // Predicated region
      $region25: #{tpu_custom_call.1} parent=5 // pred_check
        %p196 = pneg %p195
      $region26: #{tpu_custom_call.1} parent=5 // pred_check_branch
        %198 = sbr.rel (%p196) target = $region28
      $region27: #{tpu_custom_call.1} parent=5 // pred_region
        // Predicated region
        $region29: #{tpu_custom_call.1} parent=27 // pred_check
          %p199 = pneg %p70
        $region30: #{tpu_custom_call.1} parent=27 // pred_check_branch
          %201 = sbr.rel (%p199) target = $region32
        $region31: #{tpu_custom_call.1} parent=27 // pred_region
          %s202 = sand.u32 %s15, 1
          %s203 = scalar_lea.sflag [#allocation6], %s202
          %s204 = sand.u32 %s60, 1
          %s205 = smul.addr %s204, 8
          %s206 = scalar_lea.vmem [#allocation5], %s205
          %s208 = ssub.s32 128, 128
          %209 = vsyncadd %s203, %s208
          %s210 = sadd.s32 %s22, %s23
          %s211 = smul.addr %s210, 128
          %s212 = scalar_lea.hbm %s1, %s211
          %s214 = sshll.u32 %s206, 4
          %s215 = int_to_ptr.vmem [resolvable:$true] %s214
          %217 = dma.hbm_to_vmem [thread:$0]  %s212, 128, %s215, %s203
        $region32: #{tpu_custom_call.1} parent=27 // pred_fallthru
          _
      $region28: #{tpu_custom_call.1} parent=5 // pred_fallthru
        _
      %p218 = scmp.le.s32.totalorder 1, %s15
      %p219 = scmp.lt.s32.totalorder %s15, 3
      %p220 = pnand %p218, %p219
      %p221 = pneg %p220
      // Predicated region
      $region33: #{tpu_custom_call.1} parent=5 // pred_check
        _
      $region34: #{tpu_custom_call.1} parent=5 // pred_check_branch
        %223 = sbr.rel (%p220) target = $region36
      $region35: #{tpu_custom_call.1} parent=5 // pred_region
        %s224 = ssub.s32 %s15, 1
        // Predicated region
        $region37: #{tpu_custom_call.1} parent=35 // pred_check
          %p225 = pneg %p48
        $region38: #{tpu_custom_call.1} parent=35 // pred_check_branch
          %227 = sbr.rel (%p225) target = $region40
        $region39: #{tpu_custom_call.1} parent=35 // pred_region
          %228 = dma.done [#allocation3], 128
        $region40: #{tpu_custom_call.1} parent=35 // pred_fallthru
          _
        %s229 = sand.u32 %s20, 1
        %s230 = scalar_lea.sflag [#allocation6], %s229
        %s231 = sand.u32 %s63, 1
        %s232 = smul.addr %s231, 8
        %s233 = scalar_lea.vmem [#allocation5], %s232
        // Predicated region
        $region41: #{tpu_custom_call.1} parent=35 // pred_check
          %p234 = pneg %p76
        $region42: #{tpu_custom_call.1} parent=35 // pred_check_branch
          %236 = sbr.rel (%p234) target = $region44
        $region43: #{tpu_custom_call.1} parent=35 // pred_region
          %237 = dma.done %s230, 128
        $region44: #{tpu_custom_call.1} parent=35 // pred_fallthru
          _
        // Predicated region
        $region45: #{tpu_custom_call.1} parent=35 // pred_check
          %p238 = pneg %p97
        $region46: #{tpu_custom_call.1} parent=35 // pred_check_branch
          %240 = sbr.rel (%p238) target = $region48
        $region47: #{tpu_custom_call.1} parent=35 // pred_region
          %241 = dma.done [#allocation6], 512
        $region48: #{tpu_custom_call.1} parent=35 // pred_fallthru
          _
        %p242 = pneg %p48
        %p243 = pneg %p45
        %s244 = sand.u32 %s20, 1
        %s245 = scalar_lea.sflag [#allocation6], %s244
        %s246 = sand.u32 %s63, 1
        %s247 = smul.addr %s246, 8
        %s248 = scalar_lea.vmem [#allocation5], %s247
        %p249 = pneg %p76
        %p250 = pneg %p73
        %p251 = pneg %p97
        %p252 = pneg %p94
        %p253 = scmp.lt.s32.totalorder %s24, 0
        %s254 = scalar_select %p253, %s24, 0
        %s255 = smul.addr %s254, 8
        %s256 = scalar_lea.vmem %s3, %s255
        %p257 = pneg %p123
        %p258 = pneg %p120
        %p259 = pneg %p149
        %p260 = pneg %p146
        %p261 = scmp.lt.s32.totalorder %s24, 0
        %s262 = scalar_select %p261, %s24, 0
        %s263 = smul.addr %s262, 8
        %s264 = scalar_lea.vmem %s3, %s263
        %p265 = scmp.eq.s32.totalorder %s25, 0
        // Predicated region
        $region49: #{tpu_custom_call.1} parent=35 // pred_check
          %p266 = pneg %p265
        $region50: #{tpu_custom_call.1} parent=35 // pred_check_branch
          %268 = sbr.rel (%p266) target = $region52
        $region51: #{tpu_custom_call.1} parent=35 // pred_region
          %269 = vst [vmem:[#allocation8] sm:$0xff] 0.0
        $region52: #{tpu_custom_call.1} parent=35 // pred_fallthru
          _
        %v270 = vld [vmem:[%s233] sm:$0xff]
        %v271 = vld [vmem:[#allocation2] sm:$0xff]
        %vm272 = vcmask 64512
        %v274 = vsel %vm272, %v270, 0
        %276 = vmatprep.subr.mxu0 0.0
        %277 = vmatpush1.msra.mxu0 %v271
        %278 = vmatprep.subr.mxu0 0.0
        %279 = vmatpush1.msra.mxu0 0.0
        %280 = vmatprep.subr.mxu0 0.0
        %281 = vmatpush1.msra.mxu0 0.0
        %282 = vmatprep.subr.mxu0 0.0
        %283 = vmatpush1.msra.mxu0 0.0
        %284 = vmatprep.subr.mxu0 0.0
        %285 = vmatpush1.msra.mxu0 0.0
        %286 = vmatprep.subr.mxu0 0.0
        %287 = vmatpush1.msra.mxu0 0.0
        %288 = vmatprep.subr.mxu0 0.0
        %289 = vmatpush1.msra.mxu0 0.0
        %290 = vmatprep.subr.mxu0 0.0
        %291 = vmatpush1.msra.mxu0 0.0
        %292 = vmatprep.subr.mxu0 0.0
        %293 = vmatpush1.msra.mxu0 0.0
        %294 = vmatprep.subr.mxu0 0.0
        %295 = vmatpush1.msra.mxu0 0.0
        %296 = vmatprep.subr.mxu0 0.0
        %297 = vmatpush1.msra.mxu0 0.0
        %298 = vmatprep.subr.mxu0 0.0
        %299 = vmatpush1.msra.mxu0 0.0
        %300 = vmatprep.subr.mxu0 0.0
        %301 = vmatpush1.msra.mxu0 0.0
        %302 = vmatprep.subr.mxu0 0.0
        %303 = vmatpush1.msra.mxu0 0.0
        %304 = vmatprep.subr.mxu0 0.0
        %305 = vmatpush1.msra.mxu0 0.0
        %306 = vmatprep.subr.mxu0 0.0
        %307 = vmatpush1.msra.mxu0 0.0
        %308 = vmatprep.subr.mxu0 0.0
        %309 = vmatpush1.msra.mxu0 0.0
        %310 = vmatprep.subr.mxu0 0.0
        %311 = vmatpush1.msra.mxu0 0.0
        %312 = vmatprep.subr.mxu0 0.0
        %313 = vmatpush1.msra.mxu0 0.0
        %314 = vmatprep.subr.mxu0 0.0
        %315 = vmatpush1.msra.mxu0 0.0
        %316 = vmatprep.subr.mxu0 0.0
        %317 = vmatpush1.msra.mxu0 0.0
        %318 = vmatprep.subr.mxu0 0.0
        %319 = vmatpush1.msra.mxu0 0.0
        %320 = vmatprep.subr.mxu0 0.0
        %321 = vmatpush1.msra.mxu0 0.0
        %322 = vmatprep.subr.mxu0 0.0
        %323 = vmatpush1.msra.mxu0 0.0
        %324 = vmatprep.subr.mxu0 0.0
        %325 = vmatpush1.msra.mxu0 0.0
        %326 = vmatprep.subr.mxu0 0.0
        %327 = vmatpush1.msra.mxu0 0.0
        %328 = vmatprep.subr.mxu0 0.0
        %329 = vmatpush1.msra.mxu0 0.0
        %330 = vmatprep.subr.mxu0 0.0
        %331 = vmatpush1.msra.mxu0 0.0
        %332 = vmatprep.subr.mxu0 0.0
        %333 = vmatpush1.msra.mxu0 0.0
        %334 = vmatprep.subr.mxu0 0.0
        %335 = vmatpush1.msra.mxu0 0.0
        %336 = vmatprep.subr.mxu0 0.0
        %337 = vmatpush1.msra.mxu0 0.0
        %338 = vmatprep.subr.mxu0 0.0
        %339 = vmatpush1.msra.mxu0 0.0
        %340 = vmatprep.mubr.f32.mxu0 0.0
        %341 = vmatmul.mubr.f32.gmra.mrb[0].mxu0 %v274
        %v342 = vpop.f32.mrb[0].mxu0
        %v343 = vadd.f32 0.0, %v342
        %v344 = vpop.f32.mrb[0].mxu0
        %345 = vdwg.mxu0
        %v346 = vld [vmem:[#allocation8] sm:$0xff]
        %s347 = smul.u32 %s25, 16
        %s348 = scalar_lea.vmem [#allocation7], %s347
        %v349 = vld [vmem:[%s348] sm:$0xff]
        %v350 = vld [vmem:[%s348 + $0x8] sm:$0xff]
        %vm351 = vcmask 130048
        %v353 = vsel %vm351, %v343, 0
        %355 = vmatprep.subr.mxu0 0.0
        %356 = vmatpush1.msra.mxu0 %v349
        %357 = vmatprep.subr.mxu0 0.0
        %358 = vmatpush1.msra.mxu0 %v350
        %359 = vmatprep.subr.mxu0 0.0
        %360 = vmatpush1.msra.mxu0 0.0
        %361 = vmatprep.subr.mxu0 0.0
        %362 = vmatpush1.msra.mxu0 0.0
        %363 = vmatprep.subr.mxu0 0.0
        %364 = vmatpush1.msra.mxu0 0.0
        %365 = vmatprep.subr.mxu0 0.0
        %366 = vmatpush1.msra.mxu0 0.0
        %367 = vmatprep.subr.mxu0 0.0
        %368 = vmatpush1.msra.mxu0 0.0
        %369 = vmatprep.subr.mxu0 0.0
        %370 = vmatpush1.msra.mxu0 0.0
        %371 = vmatprep.subr.mxu0 0.0
        %372 = vmatpush1.msra.mxu0 0.0
        %373 = vmatprep.subr.mxu0 0.0
        %374 = vmatpush1.msra.mxu0 0.0
        %375 = vmatprep.subr.mxu0 0.0
        %376 = vmatpush1.msra.mxu0 0.0
        %377 = vmatprep.subr.mxu0 0.0
        %378 = vmatpush1.msra.mxu0 0.0
        %379 = vmatprep.subr.mxu0 0.0
        %380 = vmatpush1.msra.mxu0 0.0
        %381 = vmatprep.subr.mxu0 0.0
        %382 = vmatpush1.msra.mxu0 0.0
        %383 = vmatprep.subr.mxu0 0.0
        %384 = vmatpush1.msra.mxu0 0.0
        %385 = vmatprep.subr.mxu0 0.0
        %386 = vmatpush1.msra.mxu0 0.0
        %387 = vmatprep.subr.mxu0 0.0
        %388 = vmatpush1.msra.mxu0 0.0
        %389 = vmatprep.subr.mxu0 0.0
        %390 = vmatpush1.msra.mxu0 0.0
        %391 = vmatprep.subr.mxu0 0.0
        %392 = vmatpush1.msra.mxu0 0.0
        %393 = vmatprep.subr.mxu0 0.0
        %394 = vmatpush1.msra.mxu0 0.0
        %395 = vmatprep.subr.mxu0 0.0
        %396 = vmatpush1.msra.mxu0 0.0
        %397 = vmatprep.subr.mxu0 0.0
        %398 = vmatpush1.msra.mxu0 0.0
        %399 = vmatprep.subr.mxu0 0.0
        %400 = vmatpush1.msra.mxu0 0.0
        %401 = vmatprep.subr.mxu0 0.0
        %402 = vmatpush1.msra.mxu0 0.0
        %403 = vmatprep.subr.mxu0 0.0
        %404 = vmatpush1.msra.mxu0 0.0
        %405 = vmatprep.subr.mxu0 0.0
        %406 = vmatpush1.msra.mxu0 0.0
        %407 = vmatprep.subr.mxu0 0.0
        %408 = vmatpush1.msra.mxu0 0.0
        %409 = vmatprep.subr.mxu0 0.0
        %410 = vmatpush1.msra.mxu0 0.0
        %411 = vmatprep.subr.mxu0 0.0
        %412 = vmatpush1.msra.mxu0 0.0
        %413 = vmatprep.subr.mxu0 0.0
        %414 = vmatpush1.msra.mxu0 0.0
        %415 = vmatprep.subr.mxu0 0.0
        %416 = vmatpush1.msra.mxu0 0.0
        %417 = vmatprep.subr.mxu0 0.0
        %418 = vmatpush1.msra.mxu0 0.0
        %419 = vmatprep.mubr.f32.mxu0 0.0
        %420 = vmatmul.mubr.f32.gmra.mrb[0].mxu0 %v353
        %v421 = vpop.f32.mrb[0].mxu0
        %v422 = vadd.f32 0.0, %v421
        %v423 = vpop.f32.mrb[0].mxu0
        %424 = vdwg.mxu0
        %v425 = vadd.f32 %v346, %v422
        %426 = vst [vmem:[#allocation8] sm:$0xff] %v425
        %p427 = scmp.eq.s32.totalorder %s25, 1
        // Predicated region
        $region53: #{tpu_custom_call.1} parent=35 // pred_check
          %p428 = pneg %p427
        $region54: #{tpu_custom_call.1} parent=35 // pred_check_branch
          %430 = sbr.rel (%p428) target = $region56
        $region55: #{tpu_custom_call.1} parent=35 // pred_region
          %v431 = vld [vmem:[#allocation8] sm:$0xff]
          %v432 = vmul.f32 %v431, 0.5
          %v433 = vld [vmem:[%s264] sm:$0xff]
          %v434 = vadd.f32 %v432, %v433
          %435 = vst [vmem:[#allocation8] sm:$0xff] %v434
        $region56: #{tpu_custom_call.1} parent=35 // pred_fallthru
          _
        // Predicated region
        $region57: #{tpu_custom_call.1} parent=35 // pred_check
          %p436 = pneg %p146
        $region58: #{tpu_custom_call.1} parent=35 // pred_check_branch
          %438 = sbr.rel (%p436) target = $region60
        $region59: #{tpu_custom_call.1} parent=35 // pred_region
          %s440 = ssub.s32 128, 128
          %441 = vsyncadd [#allocation4], %s440
          %s442 = smul.addr %s24, 128
          %s443 = scalar_lea.hbm %s4, %s442
          %s445 = sshll.u32 [#allocation8], 4
          %s446 = int_to_ptr.vmem [resolvable:$true] %s445
          %448 = dma.vmem_to_hbm [thread:$0]  %s446, 128, %s443, [#allocation4]
        $region60: #{tpu_custom_call.1} parent=35 // pred_fallthru
          _
        // Predicated region
        $region61: #{tpu_custom_call.1} parent=35 // pred_check
          %p449 = pneg %p146
        $region62: #{tpu_custom_call.1} parent=35 // pred_check_branch
          %451 = sbr.rel (%p449) target = $region64
        $region63: #{tpu_custom_call.1} parent=35 // pred_region
          %452 = dma.done [#allocation4], 128
        $region64: #{tpu_custom_call.1} parent=35 // pred_fallthru
          _
      $region36: #{tpu_custom_call.1} parent=5 // pred_fallthru
        _
      %p453 = scmp.le.s32.totalorder 2, %s15
      // Predicated region
      $region65: #{tpu_custom_call.1} parent=5 // pred_check
        %p454 = pneg %p453
      $region66: #{tpu_custom_call.1} parent=5 // pred_check_branch
        %456 = sbr.rel (%p454) target = $region68
      $region67: #{tpu_custom_call.1} parent=5 // pred_region
        %s457 = ssub.s32 %s15, 2
      $region68: #{tpu_custom_call.1} parent=5 // pred_fallthru
        _
    $region6: #{tpu_custom_call.1} parent=1 // loop_footer
      %s19 = sadd.s32 1, %s15
    $region7: #{tpu_custom_call.1} parent=1 // loop_footer_branch
      %14 = sbr.rel target = $region3
    $region8: #{tpu_custom_call.1} parent=1 // loop_exit
      _
    %458 = vsyncpa [#allocation3], 1
    %s459 = scalar_lea.sflag [#allocation3], 1
    %460 = vsyncpa %s459, 1
    %461 = vsyncpa [#allocation6], 1
    %s462 = scalar_lea.sflag [#allocation6], 1
    %463 = vsyncpa %s462, 1
    %464 = vsyncpa [#allocation4], 1
    %s465 = scalar_lea.sflag [#allocation4], 1
    %466 = vsyncpa %s465, 1

</llo_original>
